<compile_context>
chip_gen: v6e
topology: v6e:2x2x1
jax: 0.10.0
libtpu: 0.0.40
codegen_flags: <defaults>
</compile_context>

<pallas_src>
import jax
import jax.numpy as jnp
from jax.experimental import pallas as pl
from jax.experimental.pallas import tpu as pltpu


def dam_kernel(x_ref, w1_ref, b1_ref, w2_ref, b2_ref, out_ref, hacc_ref):
    # x_ref   : [TB, C, TS]  spatial tile (all channels) of this batch tile
    # w1_ref  : [C,  Hp]     fused (proj @ layer1 / (H*W)) weight, lane-padded
    # b1_ref  : [1,  Hp]
    # w2_ref  : [Hp, Op]
    # b2_ref  : [1,  Op]
    # out_ref : [TB, Op]
    # hacc_ref: [TB, Hp]     f32 accumulator of the layer1 pre-activation
    si = pl.program_id(1)
    ns = pl.num_programs(1)

    @pl.when(si == 0)
    def _init():
        hacc_ref[...] = jnp.zeros_like(hacc_ref)

    # Partial spatial sums per channel for this tile, then fold all channels
    # into the layer1 pre-activation with one tiny MXU dot: [TB,C] @ [C,Hp].
    psum = jnp.sum(x_ref[...].astype(jnp.float32), axis=-1)            # [TB, C]
    hacc_ref[...] += jnp.dot(psum, w1_ref[...],
                             preferred_element_type=jnp.float32)       # [TB, Hp]

    @pl.when(si == ns - 1)
    def _finalize():
        h = jax.nn.sigmoid(hacc_ref[...] + b1_ref[...])                # [TB, Hp]
        o = jnp.dot(h, w2_ref[...], preferred_element_type=jnp.float32)
        out_ref[...] = jax.nn.sigmoid(o + b2_ref[...]).astype(out_ref.dtype)


def _round_up(n, m):
    return ((n + m - 1) // m) * m


def _pick_ts(Sp, cap):
    """Largest multiple of 128 that divides Sp and is <= cap."""
    cap = max(128, (cap // 128) * 128)
    cap = min(cap, Sp)
    for cand in range(cap, 127, -128):
        if Sp % cand == 0:
            return cand
    return 128  # unreachable: Sp is a multiple of 128


def _pick_tb(B, C, TS, Hp, Op, budget_bytes):
    """Largest multiple-of-8 divisor of B (<=256) fitting the VMEM budget,
    preferring >= 2 batch tiles (megacore) when B allows."""
    cands = [d for d in range(8, min(B, 256) + 1, 8) if B % d == 0]
    if not cands:
        return B, 1  # B not a multiple of 8: single full-batch tile

    def vmem_ok(tb):
        x_bytes = 2 * tb * C * TS * 4      # double-buffered input tile
        out_bytes = 2 * tb * Op * 4        # double-buffered output tile
        acc_bytes = tb * Hp * 4            # resident accumulator
        return x_bytes + out_bytes + acc_bytes <= budget_bytes

    ok = [d for d in cands if vmem_ok(d)] or [cands[0]]
    two_core = [d for d in ok if B // d >= 2]
    tb = max(two_core) if two_core else max(ok)
    return tb, B // tb


def dam_forward(x, wp, w1, b1, w2, b2, *, spatial_tile=2048):
    """x: [B, C, H, W] float32. Returns [B, output_dim] float32."""
    B, C, H, W = x.shape
    S = H * W
    hidden = w1.shape[1]
    out_dim = w2.shape[1]

    Hp = _round_up(hidden, 128)
    Op = _round_up(out_dim, 128)

    # Fold (mean over H*W) -> (projection C->input_dim) -> layer1 into one
    # [C, hidden] weight, then zero-pad to lane-dense widths.
    w1f = (wp @ w1) / jnp.float32(S)
    w1f_p = jnp.pad(w1f, ((0, 0), (0, Hp - hidden)))
    b1_p = jnp.pad(b1, ((0, 0), (0, Hp - hidden)))
    w2_p = jnp.pad(w2, ((0, Hp - hidden), (0, Op - out_dim)))
    b2_p = jnp.pad(b2, ((0, 0), (0, Op - out_dim)))

    # Zero-pad the spatial axis to a multiple of 128 (sum-neutral), keep the
    # channel axis in the block so the grid has no C axis.
    Sp = _round_up(S, 128)
    x3 = x.reshape(B, C, S)
    if Sp != S:
        x3 = jnp.pad(x3, ((0, 0), (0, 0), (0, Sp - S)))

    # Lane-dense spatial tile and VMEM-budgeted batch tile.
    TS = _pick_ts(Sp, spatial_tile)
    weight_bytes = 2 * (C * Hp + Hp * Op + Hp + Op) * 4
    budget_bytes = 24 * 1024 * 1024 - weight_bytes
    TB, nb = _pick_tb(B, C, TS, Hp, Op, budget_bytes)
    ns = Sp // TS

    grid = (nb, ns)

    out_p = pl.pallas_call(
        dam_kernel,
        out_shape=jax.ShapeDtypeStruct((B, Op), jnp.float32),
        grid=grid,
        in_specs=[
            pl.BlockSpec((TB, C, TS), lambda ib, si: (ib, 0, si)),
            pl.BlockSpec((C, Hp), lambda ib, si: (0, 0)),
            pl.BlockSpec((1, Hp), lambda ib, si: (0, 0)),
            pl.BlockSpec((Hp, Op), lambda ib, si: (0, 0)),
            pl.BlockSpec((1, Op), lambda ib, si: (0, 0)),
        ],
        out_specs=pl.BlockSpec((TB, Op), lambda ib, si: (ib, 0)),
        scratch_shapes=[pltpu.VMEM((TB, Hp), jnp.float32)],
        compiler_params=pltpu.CompilerParams(
            dimension_semantics=("parallel", "arbitrary"),
            vmem_limit_bytes=32 * 1024 * 1024,
        ),
    )(x3, w1f_p, b1_p, w2_p, b2_p)

    return out_p[:, :out_dim]


if __name__ == "__main__":
    B, C, H, W = 8, 4, 16, 16
    input_dim, output_dim = 128, 10
    hidden = int(input_dim * 0.5)

    key = jax.random.PRNGKey(0)
    kx, kp, k1w, k1b, k2w, k2b = jax.random.split(key, 6)
    x = jax.random.normal(kx, (B, C, H, W), jnp.float32)

    # Stand-in backbone projection (C -> input_dim), no bias.
    bound_p = 1.0 / jnp.sqrt(jnp.float32(C))
    wp = jax.random.uniform(kp, (C, input_dim), jnp.float32, -bound_p, bound_p)

    def linear_init(kw, kb, fan_in, fan_out):
        bound = 1.0 / jnp.sqrt(jnp.float32(fan_in))
        w = jax.random.uniform(kw, (fan_in, fan_out), jnp.float32, -bound, bound)
        b = jax.random.uniform(kb, (1, fan_out), jnp.float32, -bound, bound)
        return w, b

    w1, b1 = linear_init(k1w, k1b, input_dim, hidden)
    w2, b2 = linear_init(k2w, k2b, hidden, output_dim)

    out = dam_forward(x, wp, w1, b1, w2, b2)
    out = jax.block_until_ready(out)

    # Pure-JAX reference of the same computation (mean -> proj -> MLP head).
    feats_ref = jnp.mean(x.reshape(B, C, H * W), axis=-1) @ wp
    h_ref = jax.nn.sigmoid(feats_ref @ w1 + b1)
    o_ref = jax.nn.sigmoid(h_ref @ w2 + b2)

    assert out.shape == (B, output_dim)
    assert jnp.allclose(out, o_ref, atol=1e-5, rtol=1e-5), float(
        jnp.max(jnp.abs(out - o_ref)))

    print("KERNEL_OK")
</pallas_src>

<mosaic_0001>
module attributes {stable_mosaic.version = 11 : i64} {
  func.func @dam_kernel(%arg0: i32, %arg1: i32, %arg2: memref<8x4x256xf32, #tpu.memory_space<vmem>>, %arg3: memref<4x128xf32, #tpu.memory_space<vmem>>, %arg4: memref<1x128xf32, #tpu.memory_space<vmem>>, %arg5: memref<128x128xf32, #tpu.memory_space<vmem>>, %arg6: memref<1x128xf32, #tpu.memory_space<vmem>>, %arg7: memref<8x128xf32, #tpu.memory_space<vmem>>, %arg8: memref<8x128xf32, #tpu.memory_space<vmem>>) attributes {dimension_semantics = [#tpu.dimension_semantics<parallel>, #tpu.dimension_semantics<arbitrary>], iteration_bounds = array<i64: 1, 1>, scalar_prefetch = 0 : i64, scratch_operands = 1 : i64, tpu.core_type = #tpu.core_type<tc>, window_params = [{transform_indices = @transform_0, window_bounds = array<i64: 8, 4, 256>}, {pipeline_mode = #tpu.pipeline_mode<synchronous>, transform_indices = @transform_1, window_bounds = array<i64: 4, 128>}, {pipeline_mode = #tpu.pipeline_mode<synchronous>, transform_indices = @transform_2, window_bounds = array<i64: 1, 128>}, {pipeline_mode = #tpu.pipeline_mode<synchronous>, transform_indices = @transform_3, window_bounds = array<i64: 128, 128>}, {pipeline_mode = #tpu.pipeline_mode<synchronous>, transform_indices = @transform_4, window_bounds = array<i64: 1, 128>}, {transform_indices = @transform_5, window_bounds = array<i64: 8, 128>}]} {
    %c0_i32 = arith.constant 0 : i32
    %0 = arith.cmpi eq, %arg1, %c0_i32 : i32
    %1 = arith.extui %0 : i1 to i32
    %c0_i32_0 = arith.constant 0 : i32
    %2 = arith.cmpi ne, %1, %c0_i32_0 : i32
    scf.if %2 {
      %cst_12 = arith.constant 0.000000e+00 : f32
      %13 = vector.broadcast %cst_12 : f32 to vector<8x128xf32>
      %c0_13 = arith.constant 0 : index
      %c0_14 = arith.constant 0 : index
      %14 = vector.load %arg8[%c0_13, %c0_14] : memref<8x128xf32, #tpu.memory_space<vmem>>, vector<8x128xf32>
      tpu.vector_store %arg8[%c0_13, %c0_14], %13 {strides = array<i32>} : memref<8x128xf32, #tpu.memory_space<vmem>>, vector<8x128xf32>,
    } else {
    }
    %c0 = arith.constant 0 : index
    %c0_1 = arith.constant 0 : index
    %c0_2 = arith.constant 0 : index
    %3 = vector.load %arg2[%c0, %c0_1, %c0_2] : memref<8x4x256xf32, #tpu.memory_space<vmem>>, vector<8x4x256xf32>
    %cst = arith.constant dense<0.000000e+00> : vector<8x4xf32>
    %4 = vector.multi_reduction <add>, %3, %cst [2] : vector<8x4x256xf32> to vector<8x4xf32>
    %c0_3 = arith.constant 0 : index
    %c0_4 = arith.constant 0 : index
    %5 = vector.load %arg8[%c0_3, %c0_4] : memref<8x128xf32, #tpu.memory_space<vmem>>, vector<8x128xf32>
    %c0_5 = arith.constant 0 : index
    %c0_6 = arith.constant 0 : index
    %6 = vector.load %arg3[%c0_5, %c0_6] : memref<4x128xf32, #tpu.memory_space<vmem>>, vector<4x128xf32>
    %cst_7 = arith.constant dense<0.000000e+00> : vector<8x128xf32>
    %7 = tpu.matmul %4, %6, %cst_7 {dimension_numbers = #tpu.dot_dimension_numbers<[1], [0], [0], [1], [0, 0, 1, 1], [], []>} : vector<8x4xf32>, vector<4x128xf32>, vector<8x128xf32> -> vector<8x128xf32>
    %8 = arith.addf %5, %7 : vector<8x128xf32>
    %c0_8 = arith.constant 0 : index
    %c0_9 = arith.constant 0 : index
    %9 = vector.load %arg8[%c0_8, %c0_9] : memref<8x128xf32, #tpu.memory_space<vmem>>, vector<8x128xf32>
    tpu.vector_store %arg8[%c0_8, %c0_9], %8 {strides = array<i32>} : memref<8x128xf32, #tpu.memory_space<vmem>>, vector<8x128xf32>,
    %c0_i32_10 = arith.constant 0 : i32
    %10 = arith.cmpi eq, %arg1, %c0_i32_10 : i32
    %11 = arith.extui %10 : i1 to i32
    %c0_i32_11 = arith.constant 0 : i32
    %12 = arith.cmpi ne, %11, %c0_i32_11 : i32
    scf.if %12 {
      %c0_12 = arith.constant 0 : index
      %c0_13 = arith.constant 0 : index
      %13 = vector.load %arg8[%c0_12, %c0_13] : memref<8x128xf32, #tpu.memory_space<vmem>>, vector<8x128xf32>
      %c0_14 = arith.constant 0 : index
      %c0_15 = arith.constant 0 : index
      %14 = vector.load %arg4[%c0_14, %c0_15] : memref<1x128xf32, #tpu.memory_space<vmem>>, vector<1x128xf32>
      %15 = vector.broadcast %14 : vector<1x128xf32> to vector<8x128xf32>
      %16 = arith.addf %13, %15 : vector<8x128xf32>
      %17 = arith.negf %16 : vector<8x128xf32>
      %18 = math.exp %17 : vector<8x128xf32>
      %cst_16 = arith.constant 1.000000e+00 : f32
      %19 = vector.broadcast %cst_16 : f32 to vector<8x128xf32>
      %20 = arith.addf %19, %18 : vector<8x128xf32>
      %21 = arith.divf %19, %20 : vector<8x128xf32>
      %c0_17 = arith.constant 0 : index
      %c0_18 = arith.constant 0 : index
      %22 = vector.load %arg5[%c0_17, %c0_18] : memref<128x128xf32, #tpu.memory_space<vmem>>, vector<128x128xf32>
      %cst_19 = arith.constant dense<0.000000e+00> : vector<8x128xf32>
      %23 = tpu.matmul %21, %22, %cst_19 {dimension_numbers = #tpu.dot_dimension_numbers<[1], [0], [0], [1], [0, 0, 1, 1], [], []>} : vector<8x128xf32>, vector<128x128xf32>, vector<8x128xf32> -> vector<8x128xf32>
      %c0_20 = arith.constant 0 : index
      %c0_21 = arith.constant 0 : index
      %24 = vector.load %arg6[%c0_20, %c0_21] : memref<1x128xf32, #tpu.memory_space<vmem>>, vector<1x128xf32>
      %25 = vector.broadcast %24 : vector<1x128xf32> to vector<8x128xf32>
      %26 = arith.addf %23, %25 : vector<8x128xf32>
      %27 = arith.negf %26 : vector<8x128xf32>
      %28 = math.exp %27 : vector<8x128xf32>
      %cst_22 = arith.constant 1.000000e+00 : f32
      %29 = vector.broadcast %cst_22 : f32 to vector<8x128xf32>
      %30 = arith.addf %29, %28 : vector<8x128xf32>
      %31 = arith.divf %29, %30 : vector<8x128xf32>
      %c0_23 = arith.constant 0 : index
      %c0_24 = arith.constant 0 : index
      %32 = vector.load %arg7[%c0_23, %c0_24] : memref<8x128xf32, #tpu.memory_space<vmem>>, vector<8x128xf32>
      tpu.vector_store %arg7[%c0_23, %c0_24], %31 {strides = array<i32>} : memref<8x128xf32, #tpu.memory_space<vmem>>, vector<8x128xf32>,
    } else {
    }
    return
  }
  func.func @transform_0(%arg0: i32, %arg1: i32) -> (i32, i32, i32) {
    %c0_i32 = arith.constant 0 : i32
    %c0_i32_0 = arith.constant 0 : i32
    return %arg0, %c0_i32, %arg1 : i32, i32, i32
  }
  func.func @transform_1(%arg0: i32, %arg1: i32) -> (i32, i32) {
    %c0_i32 = arith.constant 0 : i32
    %c0_i32_0 = arith.constant 0 : i32
    %c0_i32_1 = arith.constant 0 : i32
    return %c0_i32, %c0_i32_0 : i32, i32
  }
  func.func @transform_2(%arg0: i32, %arg1: i32) -> (i32, i32) {
    %c0_i32 = arith.constant 0 : i32
    %c0_i32_0 = arith.constant 0 : i32
    %c0_i32_1 = arith.constant 0 : i32
    return %c0_i32, %c0_i32_0 : i32, i32
  }
  func.func @transform_3(%arg0: i32, %arg1: i32) -> (i32, i32) {
    %c0_i32 = arith.constant 0 : i32
    %c0_i32_0 = arith.constant 0 : i32
    %c0_i32_1 = arith.constant 0 : i32
    return %c0_i32, %c0_i32_0 : i32, i32
  }
  func.func @transform_4(%arg0: i32, %arg1: i32) -> (i32, i32) {
    %c0_i32 = arith.constant 0 : i32
    %c0_i32_0 = arith.constant 0 : i32
    %c0_i32_1 = arith.constant 0 : i32
    return %c0_i32, %c0_i32_0 : i32, i32
  }
  func.func @transform_5(%arg0: i32, %arg1: i32) -> (i32, i32) {
    %c0_i32 = arith.constant 0 : i32
    %c0_i32_0 = arith.constant 0 : i32
    return %arg0, %c0_i32 : i32, i32
  }
}

</mosaic_0001>

<llo_original>
// kernel: tpu_custom_call.1
$region0: #{tpu_custom_call.1}
  #allocation0 [shape = 'u32[]', space=smem, size = 0x4, offset = 0x4, fixed_abs, tag = 'smem constant byte address 0x4 - core index']
  #allocation1 [shape = 'u32[144,128]{1,0:T(1,128)}', space=vmem, size = 0x12000, scoped, tag = 'internal scratch']
  #allocation2 [shape = 'f32[8,128]{1,0:T(8,128)}', space=vmem, size = 0x1000, scoped, tag = 'scratch operand']
  %s0 = inlined_call_operand.hbm [shape: f32[8,4,256], index: 0, kind: input, shape index: {}]
  %s1 = inlined_call_operand.hbm [shape: f32[4,128], index: 1, kind: input, shape index: {}]
  %s2 = inlined_call_operand.vmem [shape: f32[1,128], index: 2, kind: input, shape index: {}]
  %s3 = inlined_call_operand.hbm [shape: f32[128,128], index: 3, kind: input, shape index: {}]
  %s4 = inlined_call_operand.vmem [shape: f32[1,128], index: 4, kind: input, shape index: {}]
  %s5 = inlined_call_operand.hbm [shape: f32[8,128], index: 5, kind: output, shape index: {}]
  %s6 = sld [smem:[#allocation0]]
  $region50: #{tpu_custom_call.1} parent=0
    _
  %s8 = ssub.s32 1, %s6
  %s9 = scalar_select 0, %s8, %s6
  $region1: #{tpu_custom_call.1} parent=0
    #allocation3 [shape = 'u8[32768]{0}', space=vmem, size = 0x8000, scoped, tag = 'input window, operand 0, single buffered']
    #allocation4 [shape = 's32[1]{0}', space=sflag, size = 0x4, scoped, tag = 'scoped memory for tpu_custom_call.1']
    #allocation5 [shape = 's32[1]{0}', space=sflag, size = 0x4, scoped, tag = 'scoped memory for tpu_custom_call.1']
    #allocation6 [shape = 'u8[2048]{0}', space=vmem, size = 0x800, scoped, tag = 'input window, operand 1, single buffered']
    #allocation7 [shape = 's32[1]{0}', space=sflag, size = 0x4, scoped, tag = 'scoped memory for tpu_custom_call.1']
    #allocation8 [shape = 'u8[65536]{0}', space=vmem, size = 0x10000, scoped, tag = 'input window, operand 3, single buffered']
    #allocation9 [shape = 'u8[4096]{0}', space=vmem, size = 0x1000, scoped, tag = 'output window, operand 0, single buffered']
    %10 = vsyncpa [#allocation4], 0
    %11 = vsyncpa [#allocation7], 0
    %12 = vsyncpa [#allocation5], 0
    // Predicated region
    $region2: #{tpu_custom_call.1} parent=1 // pred_check
      _
    $region3: #{tpu_custom_call.1} parent=1 // pred_check_branch
      %14 = sbr.rel (0) target = $region5
    $region4: #{tpu_custom_call.1} parent=1 // pred_region
      %s16 = ssub.s32 1024, 1024
      %17 = vsyncadd [#allocation4], %s16
      %s18 = sshll.u32 [#allocation3], 4
      %s19 = int_to_ptr.vmem [resolvable:$true] %s18
      %24 = dma.hbm_to_vmem [thread:$0]  %s0, 1024, %s19, [#allocation4], 128, 128, 8
    $region5: #{tpu_custom_call.1} parent=1 // pred_fallthru
      _
    // Predicated region
    $region6: #{tpu_custom_call.1} parent=1 // pred_check
      _
    $region7: #{tpu_custom_call.1} parent=1 // pred_check_branch
      %26 = sbr.rel (0) target = $region9
    $region8: #{tpu_custom_call.1} parent=1 // pred_region
      %s28 = ssub.s32 64, 64
      %29 = vsyncadd [#allocation7], %s28
      %s31 = sshll.u32 [#allocation6], 4
      %s32 = int_to_ptr.vmem [resolvable:$true] %s31
      %34 = dma.hbm_to_vmem [thread:$0]  %s1, 64, %s32, [#allocation7]
    $region9: #{tpu_custom_call.1} parent=1 // pred_fallthru
      _
    // Predicated region
    $region10: #{tpu_custom_call.1} parent=1 // pred_check
      _
    $region11: #{tpu_custom_call.1} parent=1 // pred_check_branch
      %36 = sbr.rel (0) target = $region13
    $region12: #{tpu_custom_call.1} parent=1 // pred_region
      _
    $region13: #{tpu_custom_call.1} parent=1 // pred_fallthru
      _
    // Predicated region
    $region14: #{tpu_custom_call.1} parent=1 // pred_check
      _
    $region15: #{tpu_custom_call.1} parent=1 // pred_check_branch
      %38 = sbr.rel (0) target = $region17
    $region16: #{tpu_custom_call.1} parent=1 // pred_region
      %s40 = ssub.s32 2048, 2048
      %41 = vsyncadd [#allocation7], %s40
      %s42 = sshll.u32 [#allocation8], 4
      %s43 = int_to_ptr.vmem [resolvable:$true] %s42
      %48 = dma.hbm_to_vmem [thread:$0]  %s3, 2048, %s43, [#allocation7], 128, 128, 8
    $region17: #{tpu_custom_call.1} parent=1 // pred_fallthru
      _
    // Predicated region
    $region18: #{tpu_custom_call.1} parent=1 // pred_check
      _
    $region19: #{tpu_custom_call.1} parent=1 // pred_check_branch
      %50 = sbr.rel (0) target = $region21
    $region20: #{tpu_custom_call.1} parent=1 // pred_region
      _
    $region21: #{tpu_custom_call.1} parent=1 // pred_fallthru
      _
    // Predicated region
    $region22: #{tpu_custom_call.1} parent=1 // pred_check
      _
    $region23: #{tpu_custom_call.1} parent=1 // pred_check_branch
      %52 = sbr.rel (0) target = $region25
    $region24: #{tpu_custom_call.1} parent=1 // pred_region
      %53 = dma.done [#allocation4], 1024
    $region25: #{tpu_custom_call.1} parent=1 // pred_fallthru
      _
    // Predicated region
    $region26: #{tpu_custom_call.1} parent=1 // pred_check
      _
    $region27: #{tpu_custom_call.1} parent=1 // pred_check_branch
      %55 = sbr.rel (0) target = $region29
    $region28: #{tpu_custom_call.1} parent=1 // pred_region
      %56 = dma.done [#allocation7], 64
    $region29: #{tpu_custom_call.1} parent=1 // pred_fallthru
      _
    // Predicated region
    $region30: #{tpu_custom_call.1} parent=1 // pred_check
      _
    $region31: #{tpu_custom_call.1} parent=1 // pred_check_branch
      %58 = sbr.rel (0) target = $region33
    $region32: #{tpu_custom_call.1} parent=1 // pred_region
      %59 = dma.done [#allocation7], 2048
    $region33: #{tpu_custom_call.1} parent=1 // pred_fallthru
      _
    %p60 = scmp.eq.s32.totalorder 0, 0
    // Predicated region
    $region34: #{tpu_custom_call.1} parent=1 // pred_check
      %p61 = pneg %p60
    $region35: #{tpu_custom_call.1} parent=1 // pred_check_branch
      %63 = sbr.rel (%p61) target = $region37
    $region36: #{tpu_custom_call.1} parent=1 // pred_region
      %64 = vst [vmem:[#allocation2] sm:$0xff] 0.0
    $region37: #{tpu_custom_call.1} parent=1 // pred_fallthru
      _
    %v65 = vld [vmem:[#allocation3] sm:$0xff]
    %v66 = vld [vmem:[#allocation3 + $0x8] sm:$0xff]
    %v67 = vld [vmem:[#allocation3 + $0x10] sm:$0xff]
    %v68 = vld [vmem:[#allocation3 + $0x18] sm:$0xff]
    %v69 = vld [vmem:[#allocation3 + $0x20] sm:$0xff]
    %v70 = vld [vmem:[#allocation3 + $0x28] sm:$0xff]
    %v71 = vld [vmem:[#allocation3 + $0x30] sm:$0xff]
    %v72 = vld [vmem:[#allocation3 + $0x38] sm:$0xff]
    %v81 = vcombine.high %v65, %v65
    %v82 = vcombine.high %v66, %v66
    %v83 = vcombine.high %v67, %v67
    %v84 = vcombine.high %v68, %v68
    %v85 = vcombine.high %v69, %v69
    %v86 = vcombine.high %v70, %v70
    %v87 = vcombine.high %v71, %v71
    %v88 = vcombine.high %v72, %v72
    %vm97 = vcmask 1043456
    %v98 = vsel %vm97, %v65, 0.0
    %v99 = vsel %vm97, %v81, 0.0
    %v100 = vadd.f32 %v98, %v99
    %101 = vadd.xlane.f32.xlu0 %v100
    %v102 = vpop.xlane.xlu0 %101
    %v103 = vsel %vm97, %v66, 0.0
    %v104 = vsel %vm97, %v82, 0.0
    %v105 = vadd.f32 %v103, %v104
    %106 = vadd.xlane.f32.xlu0 %v105
    %v107 = vpop.xlane.xlu0 %106
    %v108 = vsel %vm97, %v67, 0.0
    %v109 = vsel %vm97, %v83, 0.0
    %v110 = vadd.f32 %v108, %v109
    %111 = vadd.xlane.f32.xlu0 %v110
    %v112 = vpop.xlane.xlu0 %111
    %v113 = vsel %vm97, %v68, 0.0
    %v114 = vsel %vm97, %v84, 0.0
    %v115 = vadd.f32 %v113, %v114
    %116 = vadd.xlane.f32.xlu0 %v115
    %v117 = vpop.xlane.xlu0 %116
    %v118 = vsel %vm97, %v69, 0.0
    %v119 = vsel %vm97, %v85, 0.0
    %v120 = vadd.f32 %v118, %v119
    %121 = vadd.xlane.f32.xlu0 %v120
    %v122 = vpop.xlane.xlu0 %121
    %v123 = vsel %vm97, %v70, 0.0
    %v124 = vsel %vm97, %v86, 0.0
    %v125 = vadd.f32 %v123, %v124
    %126 = vadd.xlane.f32.xlu0 %v125
    %v127 = vpop.xlane.xlu0 %126
    %v128 = vsel %vm97, %v71, 0.0
    %v129 = vsel %vm97, %v87, 0.0
    %v130 = vadd.f32 %v128, %v129
    %131 = vadd.xlane.f32.xlu0 %v130
    %v132 = vpop.xlane.xlu0 %131
    %v133 = vsel %vm97, %v72, 0.0
    %v134 = vsel %vm97, %v88, 0.0
    %v135 = vadd.f32 %v133, %v134
    %136 = vadd.xlane.f32.xlu0 %v135
    %v137 = vpop.xlane.xlu0 %136
    %v138 = vld [vmem:[#allocation2] sm:$0xff]
    %v139 = vld [vmem:[#allocation6] sm:$0xf]
    %v148 = vlaneseq
    %v149 = vand.u32 %v148, 127
    %v150 = vlaneseq
    %v151 = vshrl.u32 %v150, 7
    %v152 = vsub.s32 %v149, %v151
    %v153 = vrot.slane %v102, %v152
    %v154 = vlaneseq
    %v155 = vshrl.u32 %v154, 7
    %v156 = vsub.s32 %v149, %v155
    %v157 = vrot.slane %v107, %v156
    %v158 = vlaneseq
    %v159 = vshrl.u32 %v158, 7
    %v160 = vsub.s32 %v149, %v159
    %v161 = vrot.slane %v112, %v160
    %v162 = vlaneseq
    %v163 = vshrl.u32 %v162, 7
    %v164 = vsub.s32 %v149, %v163
    %v165 = vrot.slane %v117, %v164
    %v166 = vlaneseq
    %v167 = vshrl.u32 %v166, 7
    %v168 = vsub.s32 %v149, %v167
    %v169 = vrot.slane %v122, %v168
    %v170 = vlaneseq
    %v171 = vshrl.u32 %v170, 7
    %v172 = vsub.s32 %v149, %v171
    %v173 = vrot.slane %v127, %v172
    %v174 = vlaneseq
    %v175 = vshrl.u32 %v174, 7
    %v176 = vsub.s32 %v149, %v175
    %v177 = vrot.slane %v132, %v176
    %v178 = vlaneseq
    %v179 = vshrl.u32 %v178, 7
    %v180 = vsub.s32 %v149, %v179
    %v181 = vrot.slane %v137, %v180
    %vm182 = vcmask 1041409
    %v183 = vsel %vm182, %v157, %v153
    %vm184 = vcmask 1042434
    %v185 = vsel %vm184, %v161, %v183
    %vm186 = vcmask 1043459
    %v187 = vsel %vm186, %v165, %v185
    %vm188 = vcmask 1044484
    %v189 = vsel %vm188, %v169, %v187
    %vm190 = vcmask 1045509
    %v191 = vsel %vm190, %v173, %v189
    %vm192 = vcmask 1046534
    %v193 = vsel %vm192, %v177, %v191
    %vm194 = vcmask 1047559
    %v195 = vsel %vm194, %v181, %v193
    %vm196 = vcmask 31744
    %v197 = vsel %vm196, %v195, 0
    %v200 = vsel %vm97, %v139, 0
    %202 = vmatprep.subr.mxu0 0.0
    %203 = vmatpush1.msra.mxu0 0.0
    %204 = vmatprep.subr.mxu0 0.0
    %205 = vmatpush1.msra.mxu0 0.0
    %206 = vmatprep.subr.mxu0 0.0
    %207 = vmatpush1.msra.mxu0 0.0
    %208 = vmatprep.subr.mxu0 0.0
    %209 = vmatpush1.msra.mxu0 0.0
    %210 = vmatprep.subr.mxu0 0.0
    %211 = vmatpush1.msra.mxu0 0.0
    %212 = vmatprep.subr.mxu0 0.0
    %213 = vmatpush1.msra.mxu0 0.0
    %214 = vmatprep.subr.mxu0 0.0
    %215 = vmatpush1.msra.mxu0 0.0
    %216 = vmatprep.subr.mxu0 0.0
    %217 = vmatpush1.msra.mxu0 0.0
    %218 = vmatprep.subr.mxu0 0.0
    %219 = vmatpush1.msra.mxu0 0.0
    %220 = vmatprep.subr.mxu0 0.0
    %221 = vmatpush1.msra.mxu0 0.0
    %222 = vmatprep.subr.mxu0 0.0
    %223 = vmatpush1.msra.mxu0 0.0
    %224 = vmatprep.subr.mxu0 0.0
    %225 = vmatpush1.msra.mxu0 0.0
    %226 = vmatprep.subr.mxu0 0.0
    %227 = vmatpush1.msra.mxu0 0.0
    %228 = vmatprep.subr.mxu0 0.0
    %229 = vmatpush1.msra.mxu0 0.0
    %230 = vmatprep.subr.mxu0 0.0
    %231 = vmatpush1.msra.mxu0 0.0
    %232 = vmatprep.subr.mxu0 0.0
    %233 = vmatpush1.msra.mxu0 %v200
    %234 = vmatprep.subr.mxu0 0.0
    %235 = vmatpush2.msra.mxu0 0.0
    %236 = vmatprep.subr.mxu0 0.0
    %237 = vmatpush2.msra.mxu0 0.0
    %238 = vmatprep.subr.mxu0 0.0
    %239 = vmatpush2.msra.mxu0 0.0
    %240 = vmatprep.subr.mxu0 0.0
    %241 = vmatpush2.msra.mxu0 0.0
    %242 = vmatprep.subr.mxu0 0.0
    %243 = vmatpush2.msra.mxu0 0.0
    %244 = vmatprep.subr.mxu0 0.0
    %245 = vmatpush2.msra.mxu0 0.0
    %246 = vmatprep.subr.mxu0 0.0
    %247 = vmatpush2.msra.mxu0 0.0
    %248 = vmatprep.subr.mxu0 0.0
    %249 = vmatpush2.msra.mxu0 0.0
    %250 = vmatprep.subr.mxu0 0.0
    %251 = vmatpush2.msra.mxu0 0.0
    %252 = vmatprep.subr.mxu0 0.0
    %253 = vmatpush2.msra.mxu0 0.0
    %254 = vmatprep.subr.mxu0 0.0
    %255 = vmatpush2.msra.mxu0 0.0
    %256 = vmatprep.subr.mxu0 0.0
    %257 = vmatpush2.msra.mxu0 0.0
    %258 = vmatprep.subr.mxu0 0.0
    %259 = vmatpush2.msra.mxu0 0.0
    %260 = vmatprep.subr.mxu0 0.0
    %261 = vmatpush2.msra.mxu0 0.0
    %262 = vmatprep.subr.mxu0 0.0
    %263 = vmatpush2.msra.mxu0 0.0
    %264 = vmatprep.subr.mxu0 0.0
    %265 = vmatpush2.msra.mxu0 0.0
    %266 = vmatprep.mubr.f32.mxu0 0.0
    %267 = vmatmul.mubr.f32.gmra.mxu0 %v197
    %v268 = vpop.f32.mrf.mxu0
    %v269 = vadd.f32 0.0, %v268
    %v270 = vpop.f32.mrf.mxu0
    %271 = vdwg.mxu0
    %v272 = vadd.f32 %v138, %v269
    %273 = vst [vmem:[#allocation2] sm:$0xff] %v272
    // Predicated region
    $region38: #{tpu_custom_call.1} parent=1 // pred_check
      %p274 = pneg %p60
    $region39: #{tpu_custom_call.1} parent=1 // pred_check_branch
      %276 = sbr.rel (%p274) target = $region41
    $region40: #{tpu_custom_call.1} parent=1 // pred_region
      %v277 = vld [vmem:[#allocation2] sm:$0xff]
      %v278 = vld [vmem:[%s2] sm:$0x1]
      %v280 = vlaneseq
      %v281 = vshrl.u32 %v280, 7
      %v282 = vsub.s32 0, %v281
      %v283 = vrot.slane %v278, %v282
      %v285 = vadd.f32 %v277, %v283
      %v286 = vxor.u32 %v285, 2147483648
      %v287 = vmul.f32 %v286, 1.442695
      %v288 = vpow.pop %v287
      %v289 = vadd.f32 %v288, 1.0
      %v290 = vrcp.pop %v289
      %v291 = vmul.f32 1.0, %v290
      %v292 = vld [vmem:[#allocation8] sm:$0xff]
      %v293 = vld [vmem:[#allocation8 + $0x8] sm:$0xff]
      %v294 = vld [vmem:[#allocation8 + $0x10] sm:$0xff]
      %v295 = vld [vmem:[#allocation8 + $0x18] sm:$0xff]
      %v296 = vld [vmem:[#allocation8 + $0x20] sm:$0xff]
      %v297 = vld [vmem:[#allocation8 + $0x28] sm:$0xff]
      %v298 = vld [vmem:[#allocation8 + $0x30] sm:$0xff]
      %v299 = vld [vmem:[#allocation8 + $0x38] sm:$0xff]
      %v300 = vld [vmem:[#allocation8 + $0x40] sm:$0xff]
      %v301 = vld [vmem:[#allocation8 + $0x48] sm:$0xff]
      %v302 = vld [vmem:[#allocation8 + $0x50] sm:$0xff]
      %v303 = vld [vmem:[#allocation8 + $0x58] sm:$0xff]
      %v304 = vld [vmem:[#allocation8 + $0x60] sm:$0xff]
      %v305 = vld [vmem:[#allocation8 + $0x68] sm:$0xff]
      %v306 = vld [vmem:[#allocation8 + $0x70] sm:$0xff]
      %v307 = vld [vmem:[#allocation8 + $0x78] sm:$0xff]
      %v308 = vld [vmem:[%s4] sm:$0x1]
      %v310 = vlaneseq
      %v311 = vshrl.u32 %v310, 7
      %v312 = vsub.s32 0, %v311
      %v313 = vrot.slane %v308, %v312
      %315 = vmatprep.subr.mxu0 0.0
      %316 = vmatpush1.msra.mxu0 %v307
      %317 = vmatprep.subr.mxu0 0.0
      %318 = vmatpush1.msra.mxu0 %v306
      %319 = vmatprep.subr.mxu0 0.0
      %320 = vmatpush1.msra.mxu0 %v305
      %321 = vmatprep.subr.mxu0 0.0
      %322 = vmatpush1.msra.mxu0 %v304
      %323 = vmatprep.subr.mxu0 0.0
      %324 = vmatpush1.msra.mxu0 %v303
      %325 = vmatprep.subr.mxu0 0.0
      %326 = vmatpush1.msra.mxu0 %v302
      %327 = vmatprep.subr.mxu0 0.0
      %328 = vmatpush1.msra.mxu0 %v301
      %329 = vmatprep.subr.mxu0 0.0
      %330 = vmatpush1.msra.mxu0 %v300
      %331 = vmatprep.subr.mxu0 0.0
      %332 = vmatpush1.msra.mxu0 %v299
      %333 = vmatprep.subr.mxu0 0.0
      %334 = vmatpush1.msra.mxu0 %v298
      %335 = vmatprep.subr.mxu0 0.0
      %336 = vmatpush1.msra.mxu0 %v297
      %337 = vmatprep.subr.mxu0 0.0
      %338 = vmatpush1.msra.mxu0 %v296
      %339 = vmatprep.subr.mxu0 0.0
      %340 = vmatpush1.msra.mxu0 %v295
      %341 = vmatprep.subr.mxu0 0.0
      %342 = vmatpush1.msra.mxu0 %v294
      %343 = vmatprep.subr.mxu0 0.0
      %344 = vmatpush1.msra.mxu0 %v293
      %345 = vmatprep.subr.mxu0 0.0
      %346 = vmatpush1.msra.mxu0 %v292
      %347 = vmatprep.subr.mxu0 0.0
      %348 = vmatpush2.msra.mxu0 0.0
      %349 = vmatprep.subr.mxu0 0.0
      %350 = vmatpush2.msra.mxu0 0.0
      %351 = vmatprep.subr.mxu0 0.0
      %352 = vmatpush2.msra.mxu0 0.0
      %353 = vmatprep.subr.mxu0 0.0
      %354 = vmatpush2.msra.mxu0 0.0
      %355 = vmatprep.subr.mxu0 0.0
      %356 = vmatpush2.msra.mxu0 0.0
      %357 = vmatprep.subr.mxu0 0.0
      %358 = vmatpush2.msra.mxu0 0.0
      %359 = vmatprep.subr.mxu0 0.0
      %360 = vmatpush2.msra.mxu0 0.0
      %361 = vmatprep.subr.mxu0 0.0
      %362 = vmatpush2.msra.mxu0 0.0
      %363 = vmatprep.subr.mxu0 0.0
      %364 = vmatpush2.msra.mxu0 0.0
      %365 = vmatprep.subr.mxu0 0.0
      %366 = vmatpush2.msra.mxu0 0.0
      %367 = vmatprep.subr.mxu0 0.0
      %368 = vmatpush2.msra.mxu0 0.0
      %369 = vmatprep.subr.mxu0 0.0
      %370 = vmatpush2.msra.mxu0 0.0
      %371 = vmatprep.subr.mxu0 0.0
      %372 = vmatpush2.msra.mxu0 0.0
      %373 = vmatprep.subr.mxu0 0.0
      %374 = vmatpush2.msra.mxu0 0.0
      %375 = vmatprep.subr.mxu0 0.0
      %376 = vmatpush2.msra.mxu0 0.0
      %377 = vmatprep.subr.mxu0 0.0
      %378 = vmatpush2.msra.mxu0 0.0
      %379 = vmatprep.mubr.f32.mxu0 0.0
      %380 = vmatmul.mubr.f32.gmra.mxu0 %v291
      %v381 = vpop.f32.mrf.mxu0
      %v382 = vadd.f32 %v313, %v381
      %v383 = vpop.f32.mrf.mxu0
      %384 = vdwg.mxu0
      %v385 = vxor.u32 %v382, 2147483648
      %v386 = vmul.f32 %v385, 1.442695
      %v387 = vpow.pop %v386
      %v388 = vadd.f32 %v387, 1.0
      %v389 = vrcp.pop %v388
      %v390 = vmul.f32 1.0, %v389
      %391 = vst [vmem:[#allocation9] sm:$0xff] %v390
    $region41: #{tpu_custom_call.1} parent=1 // pred_fallthru
      _
    // Predicated region
    $region42: #{tpu_custom_call.1} parent=1 // pred_check
      _
    $region43: #{tpu_custom_call.1} parent=1 // pred_check_branch
      %393 = sbr.rel (0) target = $region45
    $region44: #{tpu_custom_call.1} parent=1 // pred_region
      %s395 = ssub.s32 128, 128
      %396 = vsyncadd [#allocation5], %s395
      %s398 = sshll.u32 [#allocation9], 4
      %s399 = int_to_ptr.vmem [resolvable:$true] %s398
      %401 = dma.vmem_to_hbm [thread:$0]  %s399, 128, %s5, [#allocation5]
    $region45: #{tpu_custom_call.1} parent=1 // pred_fallthru
      _
    // Predicated region
    $region46: #{tpu_custom_call.1} parent=1 // pred_check
      _
    $region47: #{tpu_custom_call.1} parent=1 // pred_check_branch
      %403 = sbr.rel (0) target = $region49
    $region48: #{tpu_custom_call.1} parent=1 // pred_region
      %404 = dma.done [#allocation5], 128
    $region49: #{tpu_custom_call.1} parent=1 // pred_fallthru
      _
    %405 = vsyncpa [#allocation4], 1
    %406 = vsyncpa [#allocation7], 1
    %407 = vsyncpa [#allocation5], 1

</llo_original>
